<compile_context>
chip_gen: v7x
topology: tpu7x:2x2x1
jax: 0.10.0
libtpu: 0.0.40
codegen_flags: <defaults>
</compile_context>

<pallas_src>
import functools

import jax
import jax.numpy as jnp
from jax import lax
from jax.experimental import pallas as pl
from jax.experimental.pallas import tpu as pltpu

EPS = 1e-5
NEG_SLOPE = 0.2


# ---------------------------------------------------------------------------
# Kernels
# ---------------------------------------------------------------------------
def _conv_stats_kernel(w_ref, p_ref, conv_ref, sum_ref, ssq_ref):
    # w_ref:    (Cout, K)     -- conv weight, constant across the grid
    # p_ref:    (K, THW)      -- im2col patch tile for one batch element
    # conv_ref: (Cout, THW)   -- conv result tile (lane-dense, NCHW-flattened order)
    # sum_ref:  (Cout, 1)     -- per-channel running sum   (resident across HW tiles)
    # ssq_ref:  (Cout, 1)     -- per-channel running sumsq (resident across HW tiles)
    t = pl.program_id(1)

    conv = jnp.dot(w_ref[...], p_ref[...], preferred_element_type=jnp.float32)
    conv_ref[...] = conv

    @pl.when(t == 0)
    def _():
        sum_ref[...] = jnp.zeros_like(sum_ref)
        ssq_ref[...] = jnp.zeros_like(ssq_ref)

    sum_ref[...] += jnp.sum(conv, axis=1, keepdims=True)          # lane-axis XLU reduce
    ssq_ref[...] += jnp.sum(conv * conv, axis=1, keepdims=True)


def _norm_act_kernel(sum_ref, ssq_ref, conv_ref, o_ref, *, inv_hw):
    # InstanceNorm2d (affine=False, biased variance) + LeakyReLU(0.2) on a (Cout, THW) tile.
    mean = sum_ref[...] * inv_hw                      # (Cout, 1)
    var = ssq_ref[...] * inv_hw - mean * mean         # biased variance (PyTorch default)
    scale = lax.rsqrt(var + EPS)                      # single EUP rsqrt
    xn = (conv_ref[...] - mean) * scale               # lane broadcast
    o_ref[...] = jnp.where(xn >= 0, xn, NEG_SLOPE * xn).astype(o_ref.dtype)


# ---------------------------------------------------------------------------
# Glue
# ---------------------------------------------------------------------------
def _im2col_kc(x, k=4, stride=2, pad=1):
    # x: (N, Cin, H, W) -> patches (N, Cin*k*k, Hout*Wout)  [ordering (ci, kh, kw)]
    # Built directly in (K, HW) layout so no XLA transpose is needed.
    N, Cin, H, W = x.shape
    Hout = (H + 2 * pad - k) // stride + 1
    Wout = (W + 2 * pad - k) // stride + 1
    xp = jnp.pad(x, ((0, 0), (0, 0), (pad, pad), (pad, pad)))
    cols = []
    for kh in range(k):
        for kw in range(k):
            cols.append(xp[:, :, kh:kh + stride * Hout:stride, kw:kw + stride * Wout:stride])
    patches = jnp.stack(cols, axis=2)                         # (N, Cin, k*k, Hout, Wout)
    patches = patches.reshape(N, Cin * k * k, Hout * Wout)    # (N, K, HW)
    return patches, Hout, Wout


_VMEM_BUDGET = 40 * 1024 * 1024   # conservative: fits v7x (64 MiB physical) with headroom
_VMEM_LIMIT = 48 * 1024 * 1024


def _choose_hw_tile(HW, K, Cout, budget_bytes=_VMEM_BUDGET):
    """Largest HW tile (multiple of 128 dividing HW, or HW itself) under the VMEM budget."""
    def vmem_est(thw):
        # patches tile (x2 buffers) + weight (x2) + conv out tile (x2) + stats (x2 each)
        return 4 * (2 * thw * K + 2 * K * Cout + 2 * thw * Cout + 4 * Cout)

    if HW <= 1024 and vmem_est(HW) <= budget_bytes:
        return HW
    t = (min(HW, 4096) // 128) * 128
    while t >= 128:
        if HW % t == 0 and vmem_est(t) <= budget_bytes:
            return t
        t -= 128
    return HW  # fallback (e.g. HW not a multiple of 128): process the full extent


def unet_down(x, weight):
    # x: (N, Cin, H, W) float32, weight: (Cout, Cin, 4, 4) float32
    N, Cin, H, W = x.shape
    Cout = weight.shape[0]
    patches, Hout, Wout = _im2col_kc(x)
    HW = Hout * Wout
    K = Cin * 16
    w2d = weight.reshape(Cout, K)          # (Cout, K), matches (ci, kh, kw) patch ordering

    THW = _choose_hw_tile(HW, K, Cout)
    T = HW // THW

    # ---- pass 1: conv + per-channel sum / sum-of-squares ----
    cost1 = pl.CostEstimate(
        flops=2 * N * HW * K * Cout,
        transcendentals=0,
        bytes_accessed=4 * (N * K * HW + K * Cout + N * Cout * HW + 2 * N * Cout))

    conv, csum, cssq = pl.pallas_call(
        _conv_stats_kernel,
        out_shape=(
            jax.ShapeDtypeStruct((N, Cout, HW), jnp.float32),
            jax.ShapeDtypeStruct((N, Cout, 1), jnp.float32),
            jax.ShapeDtypeStruct((N, Cout, 1), jnp.float32),
        ),
        grid_spec=pltpu.PrefetchScalarGridSpec(
            num_scalar_prefetch=0,
            grid=(N, T),
            in_specs=[
                pl.BlockSpec((Cout, K), lambda n, t: (0, 0)),
                pl.BlockSpec((pl.Squeezed(), K, THW), lambda n, t: (n, 0, t)),
            ],
            out_specs=(
                pl.BlockSpec((pl.Squeezed(), Cout, THW), lambda n, t: (n, 0, t)),
                pl.BlockSpec((pl.Squeezed(), Cout, 1), lambda n, t: (n, 0, 0)),
                pl.BlockSpec((pl.Squeezed(), Cout, 1), lambda n, t: (n, 0, 0)),
            ),
        ),
        compiler_params=pltpu.CompilerParams(
            dimension_semantics=("parallel", "arbitrary"),
            vmem_limit_bytes=_VMEM_LIMIT),
        cost_estimate=cost1,
    )(w2d, patches)

    # ---- pass 2: InstanceNorm + LeakyReLU ----
    cost2 = pl.CostEstimate(
        flops=6 * N * Cout * HW,
        transcendentals=N * Cout,
        bytes_accessed=4 * (2 * N * Cout * HW + 2 * N * Cout))

    out = pl.pallas_call(
        functools.partial(_norm_act_kernel, inv_hw=1.0 / HW),
        out_shape=jax.ShapeDtypeStruct((N, Cout, HW), jnp.float32),
        grid_spec=pltpu.PrefetchScalarGridSpec(
            num_scalar_prefetch=0,
            grid=(N, T),
            in_specs=[
                pl.BlockSpec((pl.Squeezed(), Cout, 1), lambda n, t: (n, 0, 0)),
                pl.BlockSpec((pl.Squeezed(), Cout, 1), lambda n, t: (n, 0, 0)),
                pl.BlockSpec((pl.Squeezed(), Cout, THW), lambda n, t: (n, 0, t)),
            ],
            out_specs=pl.BlockSpec((pl.Squeezed(), Cout, THW), lambda n, t: (n, 0, t)),
        ),
        compiler_params=pltpu.CompilerParams(
            dimension_semantics=("parallel", "parallel"),
            vmem_limit_bytes=_VMEM_LIMIT),
        cost_estimate=cost2,
    )(csum, cssq, conv)

    # (N, Cout, HW) is already NCHW-flattened: reshape only, no transpose.
    return out.reshape(N, Cout, Hout, Wout)


# ---------------------------------------------------------------------------
# Reference + test
# ---------------------------------------------------------------------------
def _reference(x, weight):
    conv = lax.conv_general_dilated(
        x, weight, window_strides=(2, 2), padding=((1, 1), (1, 1)),
        dimension_numbers=("NCHW", "OIHW", "NCHW"))
    mean = jnp.mean(conv, axis=(2, 3), keepdims=True)
    var = jnp.mean((conv - mean) ** 2, axis=(2, 3), keepdims=True)
    xn = (conv - mean) * lax.rsqrt(var + EPS)
    return jnp.where(xn >= 0, xn, NEG_SLOPE * xn)


if __name__ == "__main__":
    key = jax.random.PRNGKey(0)
    kx, kw = jax.random.split(key)
    N, Cin, H, W = 2, 4, 16, 16
    Cout = 8
    x = jax.random.normal(kx, (N, Cin, H, W), dtype=jnp.float32)
    weight = jax.random.normal(kw, (Cout, Cin, 4, 4), dtype=jnp.float32) * 0.05

    y = unet_down(x, weight)
    jax.block_until_ready(y)

    y_ref = _reference(x, weight)
    assert y.shape == (N, Cout, H // 2, W // 2), y.shape
    assert jnp.allclose(y, y_ref, atol=1e-4, rtol=1e-4), float(jnp.max(jnp.abs(y - y_ref)))
    print("KERNEL_OK")
</pallas_src>

<mosaic_0001>
module attributes {stable_mosaic.version = 11 : i64} {
  func.func @_conv_stats_kernel(%arg0: i32, %arg1: i32, %arg2: memref<8x64xf32, #tpu.memory_space<vmem>>, %arg3: memref<1x64x64xf32, #tpu.memory_space<vmem>>, %arg4: memref<1x8x64xf32, #tpu.memory_space<vmem>>, %arg5: memref<1x8x1xf32, #tpu.memory_space<vmem>>, %arg6: memref<1x8x1xf32, #tpu.memory_space<vmem>>) attributes {dimension_semantics = [#tpu.dimension_semantics<parallel>, #tpu.dimension_semantics<arbitrary>], iteration_bounds = array<i64: 2, 1>, scalar_prefetch = 0 : i64, scratch_operands = 0 : i64, tpu.core_type = #tpu.core_type<tc>, window_params = [{pipeline_mode = #tpu.pipeline_mode<synchronous>, transform_indices = @transform_0, window_bounds = array<i64: 8, 64>}, {transform_indices = @transform_1, window_bounds = array<i64: 1, 64, 64>}, {transform_indices = @transform_2, window_bounds = array<i64: 1, 8, 64>}, {transform_indices = @transform_3, window_bounds = array<i64: 1, 8, 1>}, {transform_indices = @transform_4, window_bounds = array<i64: 1, 8, 1>}]} {
    %c0 = arith.constant 0 : index
    %c0_0 = arith.constant 0 : index
    %0 = vector.load %arg2[%c0, %c0_0] : memref<8x64xf32, #tpu.memory_space<vmem>>, vector<8x64xf32>
    %c0_1 = arith.constant 0 : index
    %c0_2 = arith.constant 0 : index
    %c0_3 = arith.constant 0 : index
    %1 = vector.load %arg3[%c0_1, %c0_2, %c0_3] : memref<1x64x64xf32, #tpu.memory_space<vmem>>, vector<1x64x64xf32>
    %2 = vector.shape_cast %1 : vector<1x64x64xf32> to vector<64x64xf32>
    %cst = arith.constant dense<0.000000e+00> : vector<8x64xf32>
    %3 = tpu.matmul %0, %2, %cst {dimension_numbers = #tpu.dot_dimension_numbers<[1], [0], [0], [1], [0, 0, 1, 1], [], []>} : vector<8x64xf32>, vector<64x64xf32>, vector<8x64xf32> -> vector<8x64xf32>
    %c0_4 = arith.constant 0 : index
    %c0_5 = arith.constant 0 : index
    %c0_6 = arith.constant 0 : index
    %4 = vector.load %arg4[%c0_4, %c0_5, %c0_6] : memref<1x8x64xf32, #tpu.memory_space<vmem>>, vector<1x8x64xf32>
    %5 = vector.shape_cast %4 : vector<1x8x64xf32> to vector<8x64xf32>
    %6 = vector.shape_cast %3 : vector<8x64xf32> to vector<1x8x64xf32>
    tpu.vector_store %arg4[%c0_4, %c0_5, %c0_6], %6 {strides = array<i32>} : memref<1x8x64xf32, #tpu.memory_space<vmem>>, vector<1x8x64xf32>,
    %c0_i32 = arith.constant 0 : i32
    %7 = arith.cmpi eq, %arg1, %c0_i32 : i32
    %8 = arith.extui %7 : i1 to i32
    %c0_i32_7 = arith.constant 0 : i32
    %9 = arith.cmpi ne, %8, %c0_i32_7 : i32
    scf.if %9 {
      %cst_22 = arith.constant 0.000000e+00 : f32
      %27 = vector.broadcast %cst_22 : f32 to vector<8x1xf32>
      %c0_23 = arith.constant 0 : index
      %c0_24 = arith.constant 0 : index
      %c0_25 = arith.constant 0 : index
      %28 = vector.load %arg5[%c0_23, %c0_24, %c0_25] : memref<1x8x1xf32, #tpu.memory_space<vmem>>, vector<1x8x1xf32>
      %29 = vector.shape_cast %28 : vector<1x8x1xf32> to vector<8x1xf32>
      %30 = vector.shape_cast %27 : vector<8x1xf32> to vector<1x8x1xf32>
      tpu.vector_store %arg5[%c0_23, %c0_24, %c0_25], %30 {strides = array<i32>} : memref<1x8x1xf32, #tpu.memory_space<vmem>>, vector<1x8x1xf32>,
      %cst_26 = arith.constant 0.000000e+00 : f32
      %31 = vector.broadcast %cst_26 : f32 to vector<8x1xf32>
      %c0_27 = arith.constant 0 : index
      %c0_28 = arith.constant 0 : index
      %c0_29 = arith.constant 0 : index
      %32 = vector.load %arg6[%c0_27, %c0_28, %c0_29] : memref<1x8x1xf32, #tpu.memory_space<vmem>>, vector<1x8x1xf32>
      %33 = vector.shape_cast %32 : vector<1x8x1xf32> to vector<8x1xf32>
      %34 = vector.shape_cast %31 : vector<8x1xf32> to vector<1x8x1xf32>
      tpu.vector_store %arg6[%c0_27, %c0_28, %c0_29], %34 {strides = array<i32>} : memref<1x8x1xf32, #tpu.memory_space<vmem>>, vector<1x8x1xf32>,
    } else {
    }
    %c0_8 = arith.constant 0 : index
    %c0_9 = arith.constant 0 : index
    %c0_10 = arith.constant 0 : index
    %10 = vector.load %arg5[%c0_8, %c0_9, %c0_10] : memref<1x8x1xf32, #tpu.memory_space<vmem>>, vector<1x8x1xf32>
    %11 = vector.shape_cast %10 : vector<1x8x1xf32> to vector<8x1xf32>
    %cst_11 = arith.constant dense<0.000000e+00> : vector<8xf32>
    %12 = vector.multi_reduction <add>, %3, %cst_11 [1] : vector<8x64xf32> to vector<8xf32>
    %13 = vector.shape_cast %12 : vector<8xf32> to vector<8x1xf32>
    %14 = arith.addf %11, %13 : vector<8x1xf32>
    %c0_12 = arith.constant 0 : index
    %c0_13 = arith.constant 0 : index
    %c0_14 = arith.constant 0 : index
    %15 = vector.load %arg5[%c0_12, %c0_13, %c0_14] : memref<1x8x1xf32, #tpu.memory_space<vmem>>, vector<1x8x1xf32>
    %16 = vector.shape_cast %15 : vector<1x8x1xf32> to vector<8x1xf32>
    %17 = vector.shape_cast %14 : vector<8x1xf32> to vector<1x8x1xf32>
    tpu.vector_store %arg5[%c0_12, %c0_13, %c0_14], %17 {strides = array<i32>} : memref<1x8x1xf32, #tpu.memory_space<vmem>>, vector<1x8x1xf32>,
    %c0_15 = arith.constant 0 : index
    %c0_16 = arith.constant 0 : index
    %c0_17 = arith.constant 0 : index
    %18 = vector.load %arg6[%c0_15, %c0_16, %c0_17] : memref<1x8x1xf32, #tpu.memory_space<vmem>>, vector<1x8x1xf32>
    %19 = vector.shape_cast %18 : vector<1x8x1xf32> to vector<8x1xf32>
    %20 = arith.mulf %3, %3 : vector<8x64xf32>
    %cst_18 = arith.constant dense<0.000000e+00> : vector<8xf32>
    %21 = vector.multi_reduction <add>, %20, %cst_18 [1] : vector<8x64xf32> to vector<8xf32>
    %22 = vector.shape_cast %21 : vector<8xf32> to vector<8x1xf32>
    %23 = arith.addf %19, %22 : vector<8x1xf32>
    %c0_19 = arith.constant 0 : index
    %c0_20 = arith.constant 0 : index
    %c0_21 = arith.constant 0 : index
    %24 = vector.load %arg6[%c0_19, %c0_20, %c0_21] : memref<1x8x1xf32, #tpu.memory_space<vmem>>, vector<1x8x1xf32>
    %25 = vector.shape_cast %24 : vector<1x8x1xf32> to vector<8x1xf32>
    %26 = vector.shape_cast %23 : vector<8x1xf32> to vector<1x8x1xf32>
    tpu.vector_store %arg6[%c0_19, %c0_20, %c0_21], %26 {strides = array<i32>} : memref<1x8x1xf32, #tpu.memory_space<vmem>>, vector<1x8x1xf32>,
    return
  }
  func.func @transform_0(%arg0: i32, %arg1: i32) -> (i32, i32) {
    %c0_i32 = arith.constant 0 : i32
    %c0_i32_0 = arith.constant 0 : i32
    %c0_i32_1 = arith.constant 0 : i32
    return %c0_i32, %c0_i32_0 : i32, i32
  }
  func.func @transform_1(%arg0: i32, %arg1: i32) -> (i32, i32, i32) {
    %c0_i32 = arith.constant 0 : i32
    %c0_i32_0 = arith.constant 0 : i32
    return %arg0, %c0_i32, %arg1 : i32, i32, i32
  }
  func.func @transform_2(%arg0: i32, %arg1: i32) -> (i32, i32, i32) {
    %c0_i32 = arith.constant 0 : i32
    %c0_i32_0 = arith.constant 0 : i32
    return %arg0, %c0_i32, %arg1 : i32, i32, i32
  }
  func.func @transform_3(%arg0: i32, %arg1: i32) -> (i32, i32, i32) {
    %c0_i32 = arith.constant 0 : i32
    %c0_i32_0 = arith.constant 0 : i32
    %c0_i32_1 = arith.constant 0 : i32
    return %arg0, %c0_i32, %c0_i32_0 : i32, i32, i32
  }
  func.func @transform_4(%arg0: i32, %arg1: i32) -> (i32, i32, i32) {
    %c0_i32 = arith.constant 0 : i32
    %c0_i32_0 = arith.constant 0 : i32
    %c0_i32_1 = arith.constant 0 : i32
    return %arg0, %c0_i32, %c0_i32_0 : i32, i32, i32
  }
}

</mosaic_0001>

<llo_original>
// kernel: tpu_custom_call.1
$region0: #{tpu_custom_call.1}
  #allocation0 [shape = 'u32[]', space=smem, size = 0x4, offset = 0x4, fixed_abs, tag = 'smem constant byte address 0x4 - core index']
  #allocation1 [shape = 'u32[144,128]{1,0:T(1,128)}', space=vmem, size = 0x12000, scoped, tag = 'internal scratch']
  %s0 = inlined_call_operand.hbm [shape: f32[8,64], index: 0, kind: input, shape index: {}]
  %s1 = inlined_call_operand.hbm [shape: f32[2,64,64], index: 1, kind: input, shape index: {}]
  %s2 = inlined_call_operand.hbm [shape: f32[2,8,64], index: 2, kind: output, shape index: {0}]
  %s3 = inlined_call_operand.vmem [shape: f32[2,8,1], index: 3, kind: output, shape index: {1}]
  %s4 = inlined_call_operand.vmem [shape: f32[2,8,1], index: 4, kind: output, shape index: {2}]
  %5 = xla_tuple %s2, %s3, %s4
  %s6 = sld [smem:[#allocation0]]
  $region69: #{tpu_custom_call.1} parent=0
    _
  %s8 = ssub.s32 1, %s6
  %s9 = scalar_select 0, %s8, %s6
  $region1: #{tpu_custom_call.1} parent=0
    #allocation2 [shape = 'u8[4096]{0}', space=vmem, size = 0x1000, scoped, tag = 'input window, operand 0, single buffered']
    #allocation3 [shape = 's32[2]{0}', space=sflag, size = 0x8, scoped, tag = 'scoped memory for tpu_custom_call.1']
    #allocation4 [shape = 's32[2]{0}', space=sflag, size = 0x8, scoped, tag = 'scoped memory for tpu_custom_call.1']
    #allocation5 [shape = 'u8[65536]{0}', space=vmem, size = 0x10000, scoped, tag = 'input window, operand 1']
    #allocation6 [shape = 's32[2]{0}', space=sflag, size = 0x8, scoped, tag = 'scoped memory for tpu_custom_call.1']
    #allocation7 [shape = 'u8[8192]{0}', space=vmem, size = 0x2000, scoped, tag = 'output window, operand 0']
    %10 = vsyncpa [#allocation3], 0
    %11 = vsyncpa [#allocation6], 0
    %s12 = scalar_lea.sflag [#allocation6], 1
    %13 = vsyncpa %s12, 0
    %14 = vsyncpa [#allocation4], 0
    %s15 = scalar_lea.sflag [#allocation4], 1
    %16 = vsyncpa %s15, 0
    loop: start=0, step=1, limit=4
    $region2: #{tpu_custom_call.1} parent=1 // loop_pre_header
      _
    $region3: #{tpu_custom_call.1} parent=1 // loop_header
      %s18 = sphi 0, %s22
      %p19 = scmp.ge.s32.totalorder %s18, 4
      %s25 = sphi 0, %s37
      %s26 = sphi 0, %s33
      %s27 = sphi 0, %s25
      %s28 = sphi 0, %s26
      %s29 = sphi 0, %s27
      %s30 = sphi 0, %s28
      %s38 = sphi 0, %s38
      %s40 = sphi 0, %s38
      %s41 = sphi 0, %s40
      %s55 = sphi 0, %s41
      %s63 = sphi 0, %s65
      %s66 = sphi 0, %s63
      %s67 = sphi 0, %s66
      %s83 = sphi 0, %s67
      %s91 = sphi 0, %s93
      %s94 = sphi 0, %s91
      %s95 = sphi 0, %s94
      %s111 = sphi 0, %s95
      %s117 = sphi 0, %s119
      %s120 = sphi 0, %s117
      %s121 = sphi 0, %s120
      %s137 = sphi 0, %s121
      %s143 = sphi 0, %s145
      %s146 = sphi 0, %s143
      %s147 = sphi 0, %s146
      %s163 = sphi 0, %s147
    $region4: #{tpu_custom_call.1} parent=1 // loop_header_branch
      %21 = sbr.rel (%p19) target = $region8
    $region5: #{tpu_custom_call.1} parent=1 // loop_body
      %s23 = ssub.s32 %s18, 1
      %s24 = ssub.s32 %s18, 2
      %s31 = sadd.s32 1, %s26
      %p32 = scmp.ge.s32.totalorder %s31, 1
      %s33 = scalar_select %p32, 0, %s31
      %s34 = sadd.s32 1, %s25
      %s35 = scalar_select %p32, %s34, %s25
      %p36 = scmp.ge.s32.totalorder %s35, 2
      %s37 = scalar_select %p36, 0, %s35
      %s39 = sadd.s32 %s38, 1
      %p42 = scmp.eq.s32.totalorder %s18, 1
      %p43 = scmp.ne.s32.totalorder %s38, %s40
      %p44 = scmp.eq.s32.totalorder %s18, 0
      %p45 = por %p43, %p44
      %p46 = scmp.ne.s32.totalorder %s38, %s40
      %p47 = scmp.eq.s32.totalorder %s23, 1
      %p48 = por %p46, %p47
      %p49 = scmp.ne.s32.totalorder %s40, %s41
      %p50 = scmp.eq.s32.totalorder %s23, 0
      %p51 = por %p49, %p50
      %p52 = scmp.ne.s32.totalorder %s40, %s41
      %p53 = scmp.eq.s32.totalorder %s24, 1
      %p54 = por %p52, %p53
      %p56 = scmp.ne.s32.totalorder %s41, %s55
      %p57 = scmp.eq.s32.totalorder %s24, 0
      %p58 = por %p56, %p57
      %s59 = ssub.s32 %s25, %s37
      %s60 = ssub.s32 %s26, %s33
      %s61 = sor.u32 %s59, %s60
      %p62 = scmp.eq.s32.totalorder %s61, 0
      %s64 = sadd.s32 %s63, 1
      %s65 = scalar_select %p62, %s63, %s64
      %p68 = pneg %p62
      %p69 = scmp.eq.s32.totalorder %s18, 1
      %p70 = por %p68, %p69
      %p71 = scmp.ne.s32.totalorder %s63, %s66
      %p72 = scmp.eq.s32.totalorder %s18, 0
      %p73 = por %p71, %p72
      %p74 = scmp.ne.s32.totalorder %s63, %s66
      %p75 = scmp.eq.s32.totalorder %s23, 1
      %p76 = por %p74, %p75
      %p77 = scmp.ne.s32.totalorder %s66, %s67
      %p78 = scmp.eq.s32.totalorder %s23, 0
      %p79 = por %p77, %p78
      %p80 = scmp.ne.s32.totalorder %s66, %s67
      %p81 = scmp.eq.s32.totalorder %s24, 1
      %p82 = por %p80, %p81
      %p84 = scmp.ne.s32.totalorder %s67, %s83
      %p85 = scmp.eq.s32.totalorder %s24, 0
      %p86 = por %p84, %p85
      %s87 = ssub.s32 %s25, %s37
      %s88 = ssub.s32 %s26, %s33
      %s89 = sor.u32 %s87, %s88
      %p90 = scmp.eq.s32.totalorder %s89, 0
      %s92 = sadd.s32 %s91, 1
      %s93 = scalar_select %p90, %s91, %s92
      %p96 = pneg %p90
      %p97 = scmp.eq.s32.totalorder %s18, 1
      %p98 = por %p96, %p97
      %p99 = scmp.ne.s32.totalorder %s91, %s94
      %p100 = scmp.eq.s32.totalorder %s18, 0
      %p101 = por %p99, %p100
      %p102 = scmp.ne.s32.totalorder %s91, %s94
      %p103 = scmp.eq.s32.totalorder %s23, 1
      %p104 = por %p102, %p103
      %p105 = scmp.ne.s32.totalorder %s94, %s95
      %p106 = scmp.eq.s32.totalorder %s23, 0
      %p107 = por %p105, %p106
      %p108 = scmp.ne.s32.totalorder %s94, %s95
      %p109 = scmp.eq.s32.totalorder %s24, 1
      %p110 = por %p108, %p109
      %p112 = scmp.ne.s32.totalorder %s95, %s111
      %p113 = scmp.eq.s32.totalorder %s24, 0
      %p114 = por %p112, %p113
      %s115 = ssub.s32 %s25, %s37
      %p116 = scmp.eq.s32.totalorder %s115, 0
      %s118 = sadd.s32 %s117, 1
      %s119 = scalar_select %p116, %s117, %s118
      %p122 = pneg %p116
      %p123 = scmp.eq.s32.totalorder %s18, 1
      %p124 = por %p122, %p123
      %p125 = scmp.ne.s32.totalorder %s117, %s120
      %p126 = scmp.eq.s32.totalorder %s18, 0
      %p127 = por %p125, %p126
      %p128 = scmp.ne.s32.totalorder %s117, %s120
      %p129 = scmp.eq.s32.totalorder %s23, 1
      %p130 = por %p128, %p129
      %p131 = scmp.ne.s32.totalorder %s120, %s121
      %p132 = scmp.eq.s32.totalorder %s23, 0
      %p133 = por %p131, %p132
      %p134 = scmp.ne.s32.totalorder %s120, %s121
      %p135 = scmp.eq.s32.totalorder %s24, 1
      %p136 = por %p134, %p135
      %p138 = scmp.ne.s32.totalorder %s121, %s137
      %p139 = scmp.eq.s32.totalorder %s24, 0
      %p140 = por %p138, %p139
      %s141 = ssub.s32 %s25, %s37
      %p142 = scmp.eq.s32.totalorder %s141, 0
      %s144 = sadd.s32 %s143, 1
      %s145 = scalar_select %p142, %s143, %s144
      %p148 = pneg %p142
      %p149 = scmp.eq.s32.totalorder %s18, 1
      %p150 = por %p148, %p149
      %p151 = scmp.ne.s32.totalorder %s143, %s146
      %p152 = scmp.eq.s32.totalorder %s18, 0
      %p153 = por %p151, %p152
      %p154 = scmp.ne.s32.totalorder %s143, %s146
      %p155 = scmp.eq.s32.totalorder %s23, 1
      %p156 = por %p154, %p155
      %p157 = scmp.ne.s32.totalorder %s146, %s147
      %p158 = scmp.eq.s32.totalorder %s23, 0
      %p159 = por %p157, %p158
      %p160 = scmp.ne.s32.totalorder %s146, %s147
      %p161 = scmp.eq.s32.totalorder %s24, 1
      %p162 = por %p160, %p161
      %p164 = scmp.ne.s32.totalorder %s147, %s163
      %p165 = scmp.eq.s32.totalorder %s24, 0
      %p166 = por %p164, %p165
      %p167 = scmp.le.s32.totalorder 1, %s18
      %p168 = scmp.lt.s32.totalorder %s18, 3
      %p169 = pnand %p167, %p168
      %p170 = pneg %p169
      // Predicated region
      $region9: #{tpu_custom_call.1} parent=5 // pred_check
        _
      $region10: #{tpu_custom_call.1} parent=5 // pred_check_branch
        %172 = sbr.rel (%p169) target = $region12
      $region11: #{tpu_custom_call.1} parent=5 // pred_region
        %s173 = ssub.s32 %s18, 1
        // Predicated region
        $region13: #{tpu_custom_call.1} parent=11 // pred_check
          %p174 = pneg %p51
        $region14: #{tpu_custom_call.1} parent=11 // pred_check_branch
          %176 = sbr.rel (%p174) target = $region16
        $region15: #{tpu_custom_call.1} parent=11 // pred_region
          %s178 = ssub.s32 128, 128
          %179 = vsyncadd [#allocation3], %s178
          %s181 = sshll.u32 [#allocation2], 4
          %s182 = int_to_ptr.vmem [resolvable:$true] %s181
          %184 = dma.hbm_to_vmem [thread:$0]  %s0, 128, %s182, [#allocation3]
        $region16: #{tpu_custom_call.1} parent=11 // pred_fallthru
          _
      $region12: #{tpu_custom_call.1} parent=5 // pred_fallthru
        _
      %p185 = scmp.lt.s32.totalorder %s18, 2
      // Predicated region
      $region17: #{tpu_custom_call.1} parent=5 // pred_check
        %p186 = pneg %p185
      $region18: #{tpu_custom_call.1} parent=5 // pred_check_branch
        %188 = sbr.rel (%p186) target = $region20
      $region19: #{tpu_custom_call.1} parent=5 // pred_region
        // Predicated region
        $region21: #{tpu_custom_call.1} parent=19 // pred_check
          %p189 = pneg %p73
        $region22: #{tpu_custom_call.1} parent=19 // pred_check_branch
          %191 = sbr.rel (%p189) target = $region24
        $region23: #{tpu_custom_call.1} parent=19 // pred_region
          %s192 = sand.u32 %s63, 1
          %s193 = scalar_lea.sflag [#allocation6], %s192
          %s194 = sand.u32 %s63, 1
          %s195 = smul.addr %s194, 64
          %s196 = scalar_lea.vmem [#allocation5], %s195
          %s198 = ssub.s32 1024, 1024
          %199 = vsyncadd %s193, %s198
          %s200 = smul.addr %s25, 8
          %s201 = sadd.s32 %s26, %s200
          %s202 = smul.addr %s201, 128
          %s203 = scalar_lea.hbm %s1, %s202
          %s204 = sshll.u32 %s196, 4
          %s205 = int_to_ptr.vmem [resolvable:$true] %s204
          %210 = dma.hbm_to_vmem [thread:$0]  %s203, 1024, %s205, %s193, 128, 128, 8
        $region24: #{tpu_custom_call.1} parent=19 // pred_fallthru
          _
      $region20: #{tpu_custom_call.1} parent=5 // pred_fallthru
        _
      %p211 = scmp.le.s32.totalorder 1, %s18
      %p212 = scmp.lt.s32.totalorder %s18, 3
      %p213 = pnand %p211, %p212
      %p214 = pneg %p213
      // Predicated region
      $region25: #{tpu_custom_call.1} parent=5 // pred_check
        _
      $region26: #{tpu_custom_call.1} parent=5 // pred_check_branch
        %216 = sbr.rel (%p213) target = $region28
      $region27: #{tpu_custom_call.1} parent=5 // pred_region
        %s217 = ssub.s32 %s18, 1
        // Predicated region
        $region29: #{tpu_custom_call.1} parent=27 // pred_check
          %p218 = pneg %p51
        $region30: #{tpu_custom_call.1} parent=27 // pred_check_branch
          %220 = sbr.rel (%p218) target = $region32
        $region31: #{tpu_custom_call.1} parent=27 // pred_region
          %221 = dma.done [#allocation3], 128
        $region32: #{tpu_custom_call.1} parent=27 // pred_fallthru
          _
        %s222 = sand.u32 %s66, 1
        %s223 = scalar_lea.sflag [#allocation6], %s222
        %s224 = sand.u32 %s66, 1
        %s225 = smul.addr %s224, 64
        %s226 = scalar_lea.vmem [#allocation5], %s225
        // Predicated region
        $region33: #{tpu_custom_call.1} parent=27 // pred_check
          %p227 = pneg %p79
        $region34: #{tpu_custom_call.1} parent=27 // pred_check_branch
          %229 = sbr.rel (%p227) target = $region36
        $region35: #{tpu_custom_call.1} parent=27 // pred_region
          %230 = dma.done %s223, 1024
        $region36: #{tpu_custom_call.1} parent=27 // pred_fallthru
          _
        %p231 = pneg %p51
        %p232 = pneg %p48
        %s233 = sand.u32 %s66, 1
        %s234 = scalar_lea.sflag [#allocation6], %s233
        %s235 = sand.u32 %s66, 1
        %s236 = smul.addr %s235, 64
        %s237 = scalar_lea.vmem [#allocation5], %s236
        %p238 = pneg %p79
        %p239 = pneg %p76
        %p240 = pneg %p107
        %p241 = pneg %p104
        %s242 = sand.u32 %s94, 1
        %s243 = scalar_lea.sflag [#allocation4], %s242
        %s244 = sand.u32 %s94, 1
        %s245 = smul.addr %s244, 8
        %s246 = scalar_lea.vmem [#allocation7], %s245
        %p247 = pneg %p133
        %p248 = pneg %p130
        %p249 = scmp.lt.s32.totalorder %s27, 1
        %s250 = scalar_select %p249, %s27, 1
        %s251 = smul.addr %s250, 8
        %s252 = scalar_lea.vmem %s3, %s251
        %p253 = pneg %p159
        %p254 = pneg %p156
        %p255 = scmp.lt.s32.totalorder %s27, 1
        %s256 = scalar_select %p255, %s27, 1
        %s257 = smul.addr %s256, 8
        %s258 = scalar_lea.vmem %s4, %s257
        %p259 = scmp.lt.s32.totalorder %s27, 1
        %s260 = scalar_select %p259, %s27, 1
        %s261 = smul.addr %s260, 8
        %s262 = scalar_lea.vmem %s3, %s261
        %p263 = scmp.lt.s32.totalorder %s27, 1
        %s264 = scalar_select %p263, %s27, 1
        %s265 = smul.addr %s264, 8
        %s266 = scalar_lea.vmem %s4, %s265
        %v267 = vld [vmem:[#allocation2] sm:$0xff]
        %v268 = vld [vmem:[%s226] sm:$0xff]
        %v269 = vld [vmem:[%s226 + $0x8] sm:$0xff]
        %v270 = vld [vmem:[%s226 + $0x10] sm:$0xff]
        %v271 = vld [vmem:[%s226 + $0x18] sm:$0xff]
        %v272 = vld [vmem:[%s226 + $0x20] sm:$0xff]
        %v273 = vld [vmem:[%s226 + $0x28] sm:$0xff]
        %v274 = vld [vmem:[%s226 + $0x30] sm:$0xff]
        %v275 = vld [vmem:[%s226 + $0x38] sm:$0xff]
        %vm276 = vcmask 523264
        %v278 = vsel %vm276, %v267, 0
        %280 = vmatprep.subr.mxu0 0.0
        %281 = vmatpush1.msra.mxu0 %v268
        %282 = vmatprep.subr.mxu0 0.0
        %283 = vmatpush1.msra.mxu0 %v269
        %284 = vmatprep.subr.mxu0 0.0
        %285 = vmatpush1.msra.mxu0 %v270
        %286 = vmatprep.subr.mxu0 0.0
        %287 = vmatpush1.msra.mxu0 %v271
        %288 = vmatprep.subr.mxu0 0.0
        %289 = vmatpush1.msra.mxu0 %v272
        %290 = vmatprep.subr.mxu0 0.0
        %291 = vmatpush1.msra.mxu0 %v273
        %292 = vmatprep.subr.mxu0 0.0
        %293 = vmatpush1.msra.mxu0 %v274
        %294 = vmatprep.subr.mxu0 0.0
        %295 = vmatpush1.msra.mxu0 %v275
        %296 = vmatprep.subr.mxu0 0.0
        %297 = vmatpush1.msra.mxu0 0.0
        %298 = vmatprep.subr.mxu0 0.0
        %299 = vmatpush1.msra.mxu0 0.0
        %300 = vmatprep.subr.mxu0 0.0
        %301 = vmatpush1.msra.mxu0 0.0
        %302 = vmatprep.subr.mxu0 0.0
        %303 = vmatpush1.msra.mxu0 0.0
        %304 = vmatprep.subr.mxu0 0.0
        %305 = vmatpush1.msra.mxu0 0.0
        %306 = vmatprep.subr.mxu0 0.0
        %307 = vmatpush1.msra.mxu0 0.0
        %308 = vmatprep.subr.mxu0 0.0
        %309 = vmatpush1.msra.mxu0 0.0
        %310 = vmatprep.subr.mxu0 0.0
        %311 = vmatpush1.msra.mxu0 0.0
        %312 = vmatprep.subr.mxu0 0.0
        %313 = vmatpush1.msra.mxu0 0.0
        %314 = vmatprep.subr.mxu0 0.0
        %315 = vmatpush1.msra.mxu0 0.0
        %316 = vmatprep.subr.mxu0 0.0
        %317 = vmatpush1.msra.mxu0 0.0
        %318 = vmatprep.subr.mxu0 0.0
        %319 = vmatpush1.msra.mxu0 0.0
        %320 = vmatprep.subr.mxu0 0.0
        %321 = vmatpush1.msra.mxu0 0.0
        %322 = vmatprep.subr.mxu0 0.0
        %323 = vmatpush1.msra.mxu0 0.0
        %324 = vmatprep.subr.mxu0 0.0
        %325 = vmatpush1.msra.mxu0 0.0
        %326 = vmatprep.subr.mxu0 0.0
        %327 = vmatpush1.msra.mxu0 0.0
        %328 = vmatprep.subr.mxu0 0.0
        %329 = vmatpush1.msra.mxu0 0.0
        %330 = vmatprep.subr.mxu0 0.0
        %331 = vmatpush1.msra.mxu0 0.0
        %332 = vmatprep.subr.mxu0 0.0
        %333 = vmatpush1.msra.mxu0 0.0
        %334 = vmatprep.subr.mxu0 0.0
        %335 = vmatpush1.msra.mxu0 0.0
        %336 = vmatprep.subr.mxu0 0.0
        %337 = vmatpush1.msra.mxu0 0.0
        %338 = vmatprep.subr.mxu0 0.0
        %339 = vmatpush1.msra.mxu0 0.0
        %340 = vmatprep.subr.mxu0 0.0
        %341 = vmatpush1.msra.mxu0 0.0
        %342 = vmatprep.subr.mxu0 0.0
        %343 = vmatpush1.msra.mxu0 0.0
        %344 = vmatprep.mubr.f32.mxu0 0.0
        %345 = vmatmul.mubr.f32.gmra.mrb[0].mxu0 %v278
        %v346 = vpop.f32.mrb[0].mxu0
        %v347 = vadd.f32 0.0, %v346
        %v348 = vpop.f32.mrb[0].mxu0
        %349 = vdwg.mxu0
        %350 = vst.msk [vmem:[%s246] sm:$0xff] %vm276, %v347
        %p351 = scmp.eq.s32.totalorder %s28, 0
        // Predicated region
        $region37: #{tpu_custom_call.1} parent=27 // pred_check
          %p352 = pneg %p351
        $region38: #{tpu_custom_call.1} parent=27 // pred_check_branch
          %354 = sbr.rel (%p352) target = $region40
        $region39: #{tpu_custom_call.1} parent=27 // pred_region
          %vm355 = vcmask 7168
          %356 = vst.msk [vmem:[%s262] sm:$0xff] %vm355, 0.0
          %357 = vst.msk [vmem:[%s266] sm:$0xff] %vm355, 0.0
        $region40: #{tpu_custom_call.1} parent=27 // pred_fallthru
          _
        %v358 = vld [vmem:[%s262] sm:$0xff]
        %v359 = vsel %vm276, %v347, 0.0
        %360 = vadd.xlane.f32.xlu0 %v359
        %v361 = vpop.xlane.xlu0 %360
        %v362 = vadd.f32 %v358, %v361
        %vm363 = vcmask 7168
        %364 = vst.msk [vmem:[%s262] sm:$0xff] %vm363, %v362
        %v365 = vld [vmem:[%s266] sm:$0xff]
        %v366 = vmul.f32 %v347, %v347
        %v367 = vsel %vm276, %v366, 0.0
        %368 = vadd.xlane.f32.xlu0 %v367
        %v369 = vpop.xlane.xlu0 %368
        %v370 = vadd.f32 %v365, %v369
        %371 = vst.msk [vmem:[%s266] sm:$0xff] %vm363, %v370
        %s372 = sand.u32 %s94, 1
        %s373 = scalar_lea.sflag [#allocation4], %s372
        %s374 = sand.u32 %s94, 1
        %s375 = smul.addr %s374, 8
        %s376 = scalar_lea.vmem [#allocation7], %s375
        %p377 = scmp.lt.s32.totalorder %s27, 1
        %s378 = scalar_select %p377, %s27, 1
        %s379 = smul.addr %s378, 8
        %s380 = scalar_lea.vmem %s3, %s379
        %p381 = scmp.lt.s32.totalorder %s27, 1
        %s382 = scalar_select %p381, %s27, 1
        %s383 = smul.addr %s382, 8
        %s384 = scalar_lea.vmem %s4, %s383
        // Predicated region
        $region41: #{tpu_custom_call.1} parent=27 // pred_check
          %p385 = pneg %p104
        $region42: #{tpu_custom_call.1} parent=27 // pred_check_branch
          %387 = sbr.rel (%p385) target = $region44
        $region43: #{tpu_custom_call.1} parent=27 // pred_region
          %s389 = ssub.s32 128, 128
          %390 = vsyncadd %s373, %s389
          %s391 = sadd.s32 %s28, %s27
          %s392 = smul.addr %s391, 128
          %s393 = scalar_lea.hbm %s2, %s392
          %s395 = sshll.u32 %s376, 4
          %s396 = int_to_ptr.vmem [resolvable:$true] %s395
          %398 = dma.vmem_to_hbm [thread:$0]  %s396, 128, %s393, %s373
        $region44: #{tpu_custom_call.1} parent=27 // pred_fallthru
          _
        // Predicated region
        $region45: #{tpu_custom_call.1} parent=27 // pred_check
          %p399 = pneg %p130
        $region46: #{tpu_custom_call.1} parent=27 // pred_check_branch
          %401 = sbr.rel (%p399) target = $region48
        $region47: #{tpu_custom_call.1} parent=27 // pred_region
          _
        $region48: #{tpu_custom_call.1} parent=27 // pred_fallthru
          _
        // Predicated region
        $region49: #{tpu_custom_call.1} parent=27 // pred_check
          %p402 = pneg %p156
        $region50: #{tpu_custom_call.1} parent=27 // pred_check_branch
          %404 = sbr.rel (%p402) target = $region52
        $region51: #{tpu_custom_call.1} parent=27 // pred_region
          _
        $region52: #{tpu_custom_call.1} parent=27 // pred_fallthru
          _
      $region28: #{tpu_custom_call.1} parent=5 // pred_fallthru
        _
      %p405 = scmp.le.s32.totalorder 2, %s18
      // Predicated region
      $region53: #{tpu_custom_call.1} parent=5 // pred_check
        %p406 = pneg %p405
      $region54: #{tpu_custom_call.1} parent=5 // pred_check_branch
        %408 = sbr.rel (%p406) target = $region56
      $region55: #{tpu_custom_call.1} parent=5 // pred_region
        %s409 = ssub.s32 %s18, 2
        // Predicated region
        $region57: #{tpu_custom_call.1} parent=55 // pred_check
          %p410 = pneg %p110
        $region58: #{tpu_custom_call.1} parent=55 // pred_check_branch
          %412 = sbr.rel (%p410) target = $region60
        $region59: #{tpu_custom_call.1} parent=55 // pred_region
          %s413 = sand.u32 %s95, 1
          %s414 = scalar_lea.sflag [#allocation4], %s413
          %s415 = sand.u32 %s95, 1
          %s416 = smul.addr %s415, 8
          %s417 = scalar_lea.vmem [#allocation7], %s416
          %418 = dma.done %s414, 128
        $region60: #{tpu_custom_call.1} parent=55 // pred_fallthru
          _
        // Predicated region
        $region61: #{tpu_custom_call.1} parent=55 // pred_check
          %p419 = pneg %p136
        $region62: #{tpu_custom_call.1} parent=55 // pred_check_branch
          %421 = sbr.rel (%p419) target = $region64
        $region63: #{tpu_custom_call.1} parent=55 // pred_region
          %p422 = scmp.lt.s32.totalorder %s29, 1
          %s423 = scalar_select %p422, %s29, 1
          %s424 = smul.addr %s423, 8
          %s425 = scalar_lea.vmem %s3, %s424
        $region64: #{tpu_custom_call.1} parent=55 // pred_fallthru
          _
        // Predicated region
        $region65: #{tpu_custom_call.1} parent=55 // pred_check
          %p426 = pneg %p162
        $region66: #{tpu_custom_call.1} parent=55 // pred_check_branch
          %428 = sbr.rel (%p426) target = $region68
        $region67: #{tpu_custom_call.1} parent=55 // pred_region
          %p429 = scmp.lt.s32.totalorder %s29, 1
          %s430 = scalar_select %p429, %s29, 1
          %s431 = smul.addr %s430, 8
          %s432 = scalar_lea.vmem %s4, %s431
        $region68: #{tpu_custom_call.1} parent=55 // pred_fallthru
          _
      $region56: #{tpu_custom_call.1} parent=5 // pred_fallthru
        _
    $region6: #{tpu_custom_call.1} parent=1 // loop_footer
      %s22 = sadd.s32 1, %s18
    $region7: #{tpu_custom_call.1} parent=1 // loop_footer_branch
      %17 = sbr.rel target = $region3
    $region8: #{tpu_custom_call.1} parent=1 // loop_exit
      _
    %433 = vsyncpa [#allocation3], 1
    %s434 = scalar_lea.sflag [#allocation3], 1
    %435 = vsyncpa %s434, 1
    %436 = vsyncpa [#allocation6], 1
    %s437 = scalar_lea.sflag [#allocation6], 1
    %438 = vsyncpa %s437, 1
    %439 = vsyncpa [#allocation4], 1
    %s440 = scalar_lea.sflag [#allocation4], 1
    %441 = vsyncpa %s440, 1

</llo_original>
